<compile_context>
chip_gen: v7x
topology: tpu7x:2x2x1
jax: 0.10.0
libtpu: 0.0.40
codegen_flags: <defaults>
</compile_context>

<pallas_src>
import jax
import jax.numpy as jnp
import numpy as np
from jax.experimental import pallas as pl
from jax.experimental.pallas import tpu as pltpu


def _round_up(x, m):
    return ((x + m - 1) // m) * m


def _choose_tiles(n, u, d, tm_max, tn_max, tk_max):
    """Pick tile sizes + padded dims. tm is a multiple of 32 (int8 sublane
    packing); tn/tk are multiples of 128 (lane-dense)."""
    tm = min(_round_up(tm_max, 32), _round_up(n, 32))
    tn = min(_round_up(tn_max, 128), _round_up(d, 128))
    tk = min(_round_up(tk_max, 128), _round_up(u, 128))
    n_p, d_p, u_p = _round_up(n, tm), _round_up(d, tn), _round_up(u, tk)
    # v7x has 2 TensorCores; make sure the parallel (i, j) grid has >= 2
    # blocks when the problem is big enough, so one core is not left idle.
    while (n_p // tm) * (d_p // tn) < 2 and tm > 32:
        tm = max(32, tm // 2)
        n_p = _round_up(n, tm)
    return tm, tn, tk, n_p, u_p, d_p


def _mean_agg_kernel(mask_ref, feat_ref, inv_ref, out_ref):
    k = pl.program_id(2)

    @pl.when(k == 0)
    def _():
        out_ref[...] = jnp.zeros_like(out_ref)

    # int8 0/1 mask -> bf16 at load; native bf16 x bf16 MXU dot, f32 accumulate
    # directly into the VMEM-resident output block.
    out_ref[...] += jnp.dot(mask_ref[...].astype(jnp.bfloat16), feat_ref[...],
                            preferred_element_type=jnp.float32)

    @pl.when(k == pl.num_programs(2) - 1)
    def _():
        # Deferred mean: scale once by the precomputed reciprocal neighbor
        # count (0 for zero-neighbor / padded rows -> output row is 0).
        out_ref[...] = out_ref[...] * inv_ref[...]


def _mean_agg_call(mask_p, feats, inv_p, *, n, d, tiles):
    """mask_p: [n_p, u_p] int8 (padded), feats: [U, D] (any float dtype),
    inv_p: [n_p, 1] f32 reciprocal neighbor counts (padded)."""
    tm, tn, tk, n_p, u_p, d_p = tiles
    u = feats.shape[0]
    feat_p = jnp.pad(jnp.asarray(feats).astype(jnp.bfloat16),
                     ((0, u_p - u), (0, d_p - d)))

    grid = (n_p // tm, d_p // tn, u_p // tk)
    cost = pl.CostEstimate(
        flops=2 * n_p * u_p * d_p,
        transcendentals=0,
        bytes_accessed=(n_p * u_p            # int8 mask
                        + 2 * u_p * d_p      # bf16 features
                        + 4 * n_p * d_p      # f32 output
                        + 4 * n_p),          # f32 reciprocal counts
    )

    out_p = pl.pallas_call(
        _mean_agg_kernel,
        out_shape=jax.ShapeDtypeStruct((n_p, d_p), jnp.float32),
        grid_spec=pltpu.PrefetchScalarGridSpec(
            num_scalar_prefetch=0,
            grid=grid,
            in_specs=[
                pl.BlockSpec((tm, tk), lambda i, j, k: (i, k)),  # int8 mask
                pl.BlockSpec((tk, tn), lambda i, j, k: (k, j)),  # bf16 features
                pl.BlockSpec((tm, 1), lambda i, j, k: (i, 0)),   # f32 1/deg
            ],
            out_specs=pl.BlockSpec((tm, tn), lambda i, j, k: (i, j)),
        ),
        compiler_params=pltpu.CompilerParams(
            dimension_semantics=("parallel", "parallel", "arbitrary")),
        cost_estimate=cost,
    )(mask_p, feat_p, inv_p)
    return out_p[:n, :d]


def mean_aggregate_pallas(mask, gathered_feats, inv_counts=None, *,
                          tm_max=512, tn_max=512, tk_max=1024):
    """Generic entry point: mask [N, U] 0/1 (any numeric dtype), features
    [U, D].  If inv_counts is None it is derived from the mask."""
    n, u = mask.shape
    u2, d = gathered_feats.shape
    assert u == u2
    tiles = _choose_tiles(n, u, d, tm_max, tn_max, tk_max)
    tm, tn, tk, n_p, u_p, d_p = tiles

    mask = jnp.asarray(mask)
    if inv_counts is None:
        counts = jnp.sum(mask.astype(jnp.float32), axis=-1, keepdims=True)
        inv_counts = jnp.where(counts > 0, 1.0 / jnp.maximum(counts, 1.0), 0.0)
    mask_p = jnp.pad(mask.astype(jnp.int8), ((0, n_p - n), (0, u_p - u)))
    inv_p = jnp.pad(jnp.asarray(inv_counts, jnp.float32).reshape(n, 1),
                    ((0, n_p - n), (0, 0)))
    return _mean_agg_call(mask_p, gathered_feats, inv_p, n=n, d=d, tiles=tiles)


class MeanAggregatorPallas:
    """JAX/Pallas port of GraphSAGE Mean_aggregator."""

    def __init__(self, node_features):
        # Keep features in bf16 once: native MXU dtype, half the HBM traffic.
        self.node_features = jnp.asarray(node_features, dtype=jnp.bfloat16)

    def forward(self, sample_neighbors, unique_nodes, *,
                tm_max=512, tn_max=512, tk_max=1024):
        # --- host-side index bookkeeping identical to the PyTorch module ---
        unique_nodes_list = list(unique_nodes.keys())
        n, u = len(sample_neighbors), len(unique_nodes)
        d = self.node_features.shape[1]
        tiles = _choose_tiles(n, u, d, tm_max, tn_max, tk_max)
        tm, tn, tk, n_p, u_p, d_p = tiles

        # Build the 0/1 adjacency directly at the padded shape as int8
        # (1 B/elem): no device-side pad or cast pass for the largest operand.
        mask = np.zeros((n_p, u_p), dtype=np.int8)
        col_idx = [unique_nodes[nb] for sn in sample_neighbors for nb in sn]
        row_idx = [i for i in range(n) for _ in range(len(sample_neighbors[i]))]
        mask[row_idx, col_idx] = 1

        # Reciprocal neighbor counts are known on the host for free.
        counts = np.array([len(sn) for sn in sample_neighbors], dtype=np.float32)
        inv = np.zeros((n_p, 1), dtype=np.float32)
        inv[:n, 0] = np.where(counts > 0, 1.0 / np.maximum(counts, 1.0), 0.0)

        # TODO(synk): fuse this row gather into the kernel (scalar-prefetched
        # ids + manual make_async_copy row DMAs from node_features kept at
        # memory_space=pl.ANY) to avoid one [U, D] HBM round trip.
        ids = jnp.asarray(unique_nodes_list, dtype=jnp.int32)
        gathered = jnp.take(self.node_features, ids, axis=0)   # bf16 [U, D]

        return _mean_agg_call(jnp.asarray(mask), gathered, jnp.asarray(inv),
                              n=n, d=d, tiles=tiles)


def _reference(node_features, sample_neighbors, unique_nodes):
    unique_nodes_list = list(unique_nodes.keys())
    n, u = len(sample_neighbors), len(unique_nodes)
    mask = np.zeros((n, u), dtype=np.float32)
    col_idx = [unique_nodes[nb] for sn in sample_neighbors for nb in sn]
    row_idx = [i for i in range(n) for _ in range(len(sample_neighbors[i]))]
    mask[row_idx, col_idx] = 1.0
    mask = mask / mask.sum(-1, keepdims=True)
    feats = np.asarray(node_features)[unique_nodes_list]
    return mask @ feats


if __name__ == "__main__":
    # ---------- Test 1: module semantics at demo size ----------
    num_total_nodes = 20
    feat_dim = 32
    key = jax.random.PRNGKey(0)
    node_features = jax.random.normal(
        key, (num_total_nodes, feat_dim), dtype=jnp.float32)

    sample_neighbors = [
        [0, 1, 2],
        [3, 4],
        [5, 6, 7, 8],
        [1, 9],
        [10, 11, 12],
        [13],
        [14, 15, 2],
        [16, 17, 18, 19],
    ]
    unique_ids = []
    for sn in sample_neighbors:
        for nb in sn:
            if nb not in unique_ids:
                unique_ids.append(nb)
    unique_nodes = {nid: i for i, nid in enumerate(unique_ids)}

    agg = MeanAggregatorPallas(node_features)
    out = jax.block_until_ready(agg.forward(sample_neighbors, unique_nodes))
    ref = _reference(node_features, sample_neighbors, unique_nodes)
    # bf16 features => relaxed tolerance vs the f32 PyTorch reference.
    np.testing.assert_allclose(np.asarray(out), ref, rtol=2e-2, atol=2e-2)

    # ---------- Test 2: force a multi-tile (i, j, k) grid ----------
    key1, key2 = jax.random.split(jax.random.PRNGKey(1))
    big_mask = (jax.random.uniform(key1, (48, 300)) < 0.1).astype(jnp.float32)
    big_feats = jax.random.normal(key2, (300, 200), dtype=jnp.float32)
    out2 = jax.block_until_ready(
        mean_aggregate_pallas(big_mask, big_feats,
                              tm_max=32, tn_max=128, tk_max=128))
    m_np = np.asarray(big_mask, dtype=np.float32)
    denom = np.maximum(m_np.sum(-1, keepdims=True), 1.0)
    ref2 = (m_np / denom) @ np.asarray(big_feats, dtype=np.float32)
    np.testing.assert_allclose(np.asarray(out2), ref2, rtol=2e-2, atol=2e-2)

    print("KERNEL_OK")
</pallas_src>

<mosaic_0001>
module attributes {stable_mosaic.version = 11 : i64} {
  func.func @_mean_agg_kernel(%arg0: i32, %arg1: i32, %arg2: i32, %arg3: memref<32x128xi8, #tpu.memory_space<vmem>>, %arg4: memref<128x128xbf16, #tpu.memory_space<vmem>>, %arg5: memref<32x1xf32, #tpu.memory_space<vmem>>, %arg6: memref<32x128xf32, #tpu.memory_space<vmem>>) attributes {dimension_semantics = [#tpu.dimension_semantics<parallel>, #tpu.dimension_semantics<parallel>, #tpu.dimension_semantics<arbitrary>], iteration_bounds = array<i64: 1, 1, 1>, scalar_prefetch = 0 : i64, scratch_operands = 0 : i64, tpu.core_type = #tpu.core_type<tc>, window_params = [{transform_indices = @transform_0, window_bounds = array<i64: 32, 128>}, {transform_indices = @transform_1, window_bounds = array<i64: 128, 128>}, {transform_indices = @transform_2, window_bounds = array<i64: 32, 1>}, {transform_indices = @transform_3, window_bounds = array<i64: 32, 128>}]} {
    %c0_i32 = arith.constant 0 : i32
    %0 = arith.cmpi eq, %arg2, %c0_i32 : i32
    %1 = arith.extui %0 : i1 to i32
    %c0_i32_0 = arith.constant 0 : i32
    %2 = arith.cmpi ne, %1, %c0_i32_0 : i32
    scf.if %2 {
      %cst_10 = arith.constant 0.000000e+00 : f32
      %13 = vector.broadcast %cst_10 : f32 to vector<32x128xf32>
      %c0_11 = arith.constant 0 : index
      %c0_12 = arith.constant 0 : index
      %14 = vector.load %arg6[%c0_11, %c0_12] : memref<32x128xf32, #tpu.memory_space<vmem>>, vector<32x128xf32>
      tpu.vector_store %arg6[%c0_11, %c0_12], %13 {strides = array<i32>} : memref<32x128xf32, #tpu.memory_space<vmem>>, vector<32x128xf32>,
    } else {
    }
    %c0 = arith.constant 0 : index
    %c0_1 = arith.constant 0 : index
    %3 = vector.load %arg6[%c0, %c0_1] : memref<32x128xf32, #tpu.memory_space<vmem>>, vector<32x128xf32>
    %c0_2 = arith.constant 0 : index
    %c0_3 = arith.constant 0 : index
    %4 = vector.load %arg3[%c0_2, %c0_3] : memref<32x128xi8, #tpu.memory_space<vmem>>, vector<32x128xi8>
    %5 = arith.sitofp %4 : vector<32x128xi8> to vector<32x128xbf16>
    %c0_4 = arith.constant 0 : index
    %c0_5 = arith.constant 0 : index
    %6 = vector.load %arg4[%c0_4, %c0_5] : memref<128x128xbf16, #tpu.memory_space<vmem>>, vector<128x128xbf16>
    %cst = arith.constant dense<0.000000e+00> : vector<32x128xf32>
    %7 = tpu.matmul %5, %6, %cst {dimension_numbers = #tpu.dot_dimension_numbers<[1], [0], [0], [1], [0, 0, 1, 1], [], []>} : vector<32x128xbf16>, vector<128x128xbf16>, vector<32x128xf32> -> vector<32x128xf32>
    %8 = arith.addf %3, %7 : vector<32x128xf32>
    %c0_6 = arith.constant 0 : index
    %c0_7 = arith.constant 0 : index
    %9 = vector.load %arg6[%c0_6, %c0_7] : memref<32x128xf32, #tpu.memory_space<vmem>>, vector<32x128xf32>
    tpu.vector_store %arg6[%c0_6, %c0_7], %8 {strides = array<i32>} : memref<32x128xf32, #tpu.memory_space<vmem>>, vector<32x128xf32>,
    %c0_i32_8 = arith.constant 0 : i32
    %10 = arith.cmpi eq, %arg2, %c0_i32_8 : i32
    %11 = arith.extui %10 : i1 to i32
    %c0_i32_9 = arith.constant 0 : i32
    %12 = arith.cmpi ne, %11, %c0_i32_9 : i32
    scf.if %12 {
      %c0_10 = arith.constant 0 : index
      %c0_11 = arith.constant 0 : index
      %13 = vector.load %arg6[%c0_10, %c0_11] : memref<32x128xf32, #tpu.memory_space<vmem>>, vector<32x128xf32>
      %c0_12 = arith.constant 0 : index
      %c0_13 = arith.constant 0 : index
      %14 = vector.load %arg5[%c0_12, %c0_13] : memref<32x1xf32, #tpu.memory_space<vmem>>, vector<32x1xf32>
      %15 = vector.broadcast %14 : vector<32x1xf32> to vector<32x128xf32>
      %16 = arith.mulf %13, %15 : vector<32x128xf32>
      %c0_14 = arith.constant 0 : index
      %c0_15 = arith.constant 0 : index
      %17 = vector.load %arg6[%c0_14, %c0_15] : memref<32x128xf32, #tpu.memory_space<vmem>>, vector<32x128xf32>
      tpu.vector_store %arg6[%c0_14, %c0_15], %16 {strides = array<i32>} : memref<32x128xf32, #tpu.memory_space<vmem>>, vector<32x128xf32>,
    } else {
    }
    return
  }
  func.func @transform_0(%arg0: i32, %arg1: i32, %arg2: i32) -> (i32, i32) {
    %c0_i32 = arith.constant 0 : i32
    return %arg0, %arg2 : i32, i32
  }
  func.func @transform_1(%arg0: i32, %arg1: i32, %arg2: i32) -> (i32, i32) {
    %c0_i32 = arith.constant 0 : i32
    return %arg2, %arg1 : i32, i32
  }
  func.func @transform_2(%arg0: i32, %arg1: i32, %arg2: i32) -> (i32, i32) {
    %c0_i32 = arith.constant 0 : i32
    %c0_i32_0 = arith.constant 0 : i32
    return %arg0, %c0_i32 : i32, i32
  }
  func.func @transform_3(%arg0: i32, %arg1: i32, %arg2: i32) -> (i32, i32) {
    %c0_i32 = arith.constant 0 : i32
    return %arg0, %arg1 : i32, i32
  }
}

</mosaic_0001>

<llo_original>
// kernel: tpu_custom_call.1
$region0: #{tpu_custom_call.1}
  #allocation0 [shape = 'u32[]', space=smem, size = 0x4, offset = 0x4, fixed_abs, tag = 'smem constant byte address 0x4 - core index']
  #allocation1 [shape = 'u32[144,128]{1,0:T(1,128)}', space=vmem, size = 0x12000, scoped, tag = 'internal scratch']
  %s0 = inlined_call_operand.vmem [shape: s8[32,128], index: 0, kind: input, shape index: {}]
  %s1 = inlined_call_operand.hbm [shape: bf16[128,128], index: 1, kind: input, shape index: {}]
  %s2 = inlined_call_operand.vmem [shape: f32[32,1], index: 2, kind: input, shape index: {}]
  %s3 = inlined_call_operand.hbm [shape: f32[32,128], index: 3, kind: output, shape index: {}]
  %s4 = sld [smem:[#allocation0]]
  $region34: #{tpu_custom_call.1} parent=0
    _
  %s6 = ssub.s32 1, %s4
  %s7 = scalar_select 0, %s6, %s4
  $region1: #{tpu_custom_call.1} parent=0
    #allocation2 [shape = 'u8[32768]{0}', space=vmem, size = 0x8000, scoped, tag = 'input window, operand 1, single buffered']
    #allocation3 [shape = 's32[1]{0}', space=sflag, size = 0x4, scoped, tag = 'scoped memory for tpu_custom_call.1']
    #allocation4 [shape = 's32[1]{0}', space=sflag, size = 0x4, scoped, tag = 'scoped memory for tpu_custom_call.1']
    #allocation5 [shape = 'u8[16384]{0}', space=vmem, size = 0x4000, scoped, tag = 'output window, operand 0, single buffered']
    %8 = vsyncpa [#allocation3], 0
    %9 = vsyncpa [#allocation4], 0
    // Predicated region
    $region2: #{tpu_custom_call.1} parent=1 // pred_check
      _
    $region3: #{tpu_custom_call.1} parent=1 // pred_check_branch
      %11 = sbr.rel (0) target = $region5
    $region4: #{tpu_custom_call.1} parent=1 // pred_region
      _
    $region5: #{tpu_custom_call.1} parent=1 // pred_fallthru
      _
    // Predicated region
    $region6: #{tpu_custom_call.1} parent=1 // pred_check
      _
    $region7: #{tpu_custom_call.1} parent=1 // pred_check_branch
      %13 = sbr.rel (0) target = $region9
    $region8: #{tpu_custom_call.1} parent=1 // pred_region
      %s15 = ssub.s32 1024, 1024
      %16 = vsyncadd [#allocation3], %s15
      %s17 = sshll.u32 [#allocation2], 4
      %s18 = int_to_ptr.vmem [resolvable:$true] %s17
      %23 = dma.hbm_to_vmem [thread:$0]  %s1, 1024, %s18, [#allocation3], 64, 64, 4
    $region9: #{tpu_custom_call.1} parent=1 // pred_fallthru
      _
    // Predicated region
    $region10: #{tpu_custom_call.1} parent=1 // pred_check
      _
    $region11: #{tpu_custom_call.1} parent=1 // pred_check_branch
      %25 = sbr.rel (0) target = $region13
    $region12: #{tpu_custom_call.1} parent=1 // pred_region
      _
    $region13: #{tpu_custom_call.1} parent=1 // pred_fallthru
      _
    // Predicated region
    $region14: #{tpu_custom_call.1} parent=1 // pred_check
      _
    $region15: #{tpu_custom_call.1} parent=1 // pred_check_branch
      %27 = sbr.rel (0) target = $region17
    $region16: #{tpu_custom_call.1} parent=1 // pred_region
      %28 = dma.done [#allocation3], 1024
    $region17: #{tpu_custom_call.1} parent=1 // pred_fallthru
      _
    %p30 = scmp.eq.s32.totalorder 0, 0
    // Predicated region
    $region18: #{tpu_custom_call.1} parent=1 // pred_check
      %p31 = pneg %p30
    $region19: #{tpu_custom_call.1} parent=1 // pred_check_branch
      %33 = sbr.rel (%p31) target = $region21
    $region20: #{tpu_custom_call.1} parent=1 // pred_region
      %34 = vst [vmem:[#allocation5] sm:$0xff] 0.0
      %35 = vst [vmem:[#allocation5 + $0x8] sm:$0xff] 0.0
      %36 = vst [vmem:[#allocation5 + $0x10] sm:$0xff] 0.0
      %37 = vst [vmem:[#allocation5 + $0x18] sm:$0xff] 0.0
    $region21: #{tpu_custom_call.1} parent=1 // pred_fallthru
      _
    %v38 = vld [vmem:[#allocation5] sm:$0xff]
    %v39 = vld [vmem:[#allocation5 + $0x8] sm:$0xff]
    %v40 = vld [vmem:[#allocation5 + $0x10] sm:$0xff]
    %v41 = vld [vmem:[#allocation5 + $0x18] sm:$0xff]
    %v42 = vld [vmem:[%s0] sm:$0xff]
    %v43 = vunpack.c.l.s8.bf16 %v42
    %v44 = vunpack.c.h.s8.bf16 %v42
    %v45 = vld [vmem:[#allocation2] sm:$0xf]
    %v46 = vld [vmem:[#allocation2 + $0x4] sm:$0xf]
    %v47 = vld [vmem:[#allocation2 + $0x8] sm:$0xf]
    %v48 = vld [vmem:[#allocation2 + $0xc] sm:$0xf]
    %v49 = vld [vmem:[#allocation2 + $0x10] sm:$0xf]
    %v50 = vld [vmem:[#allocation2 + $0x14] sm:$0xf]
    %v51 = vld [vmem:[#allocation2 + $0x18] sm:$0xf]
    %v52 = vld [vmem:[#allocation2 + $0x1c] sm:$0xf]
    %v53 = vld [vmem:[#allocation2 + $0x20] sm:$0xf]
    %v54 = vld [vmem:[#allocation2 + $0x24] sm:$0xf]
    %v55 = vld [vmem:[#allocation2 + $0x28] sm:$0xf]
    %v56 = vld [vmem:[#allocation2 + $0x2c] sm:$0xf]
    %v57 = vld [vmem:[#allocation2 + $0x30] sm:$0xf]
    %v58 = vld [vmem:[#allocation2 + $0x34] sm:$0xf]
    %v59 = vld [vmem:[#allocation2 + $0x38] sm:$0xf]
    %v60 = vld [vmem:[#allocation2 + $0x3c] sm:$0xf]
    %v77 = vunpack.c.l.b16 %v45
    %v78 = vunpack.c.l.b16 %v46
    %v79 = vunpack.c.l.b16 %v47
    %v80 = vunpack.c.l.b16 %v48
    %v81 = vunpack.c.l.b16 %v49
    %v82 = vunpack.c.l.b16 %v50
    %v83 = vunpack.c.l.b16 %v51
    %v84 = vunpack.c.l.b16 %v52
    %v85 = vunpack.c.l.b16 %v53
    %v86 = vunpack.c.l.b16 %v54
    %v87 = vunpack.c.l.b16 %v55
    %v88 = vunpack.c.l.b16 %v56
    %v89 = vunpack.c.l.b16 %v57
    %v90 = vunpack.c.l.b16 %v58
    %v91 = vunpack.c.l.b16 %v59
    %v92 = vunpack.c.l.b16 %v60
    %v93 = vpack.c.b16 %v78, %v77
    %v94 = vpack.c.b16 %v80, %v79
    %v95 = vpack.c.b16 %v82, %v81
    %v96 = vpack.c.b16 %v84, %v83
    %v97 = vpack.c.b16 %v86, %v85
    %v98 = vpack.c.b16 %v88, %v87
    %v99 = vpack.c.b16 %v90, %v89
    %v100 = vpack.c.b16 %v92, %v91
    %109 = vmatprep.subr.bf16.mxu0 0
    %110 = vmatpush1.bf16.msra.mxu0 %v93
    %111 = vmatprep.subr.bf16.mxu0 0
    %112 = vmatpush1.bf16.msra.mxu0 %v94
    %113 = vmatprep.subr.bf16.mxu0 0
    %114 = vmatpush1.bf16.msra.mxu0 %v95
    %115 = vmatprep.subr.bf16.mxu0 0
    %116 = vmatpush1.bf16.msra.mxu0 %v96
    %117 = vmatprep.subr.bf16.mxu0 0
    %118 = vmatpush1.bf16.msra.mxu0 %v97
    %119 = vmatprep.subr.bf16.mxu0 0
    %120 = vmatpush1.bf16.msra.mxu0 %v98
    %121 = vmatprep.subr.bf16.mxu0 0
    %122 = vmatpush1.bf16.msra.mxu0 %v99
    %123 = vmatprep.subr.bf16.mxu0 0
    %124 = vmatpush1.bf16.msra.mxu0 %v100
    %125 = vmatprep.subr.bf16.mxu0 0
    %126 = vmatpush1.bf16.msra.mxu0 0
    %127 = vmatprep.subr.bf16.mxu0 0
    %128 = vmatpush1.bf16.msra.mxu0 0
    %129 = vmatprep.subr.bf16.mxu0 0
    %130 = vmatpush1.bf16.msra.mxu0 0
    %131 = vmatprep.subr.bf16.mxu0 0
    %132 = vmatpush1.bf16.msra.mxu0 0
    %133 = vmatprep.subr.bf16.mxu0 0
    %134 = vmatpush1.bf16.msra.mxu0 0
    %135 = vmatprep.subr.bf16.mxu0 0
    %136 = vmatpush1.bf16.msra.mxu0 0
    %137 = vmatprep.subr.bf16.mxu0 0
    %138 = vmatpush1.bf16.msra.mxu0 0
    %139 = vmatprep.subr.bf16.mxu0 0
    %140 = vmatpush1.bf16.msra.mxu0 0
    %141 = vmatprep.mubr.bf16.mxu0 0
    %142 = vmatmul.mubr.bf16.gmra.mrb[0].mxu0 %v43
    %v143 = vpop.f32.mrb[0].mxu0
    %v144 = vadd.f32 0.0, %v143
    %v145 = vpop.f32.mrb[0].mxu0
    %v146 = vpop.f32.mrb[0].mxu0
    %v147 = vadd.f32 0.0, %v146
    %v148 = vpop.f32.mrb[0].mxu0
    %149 = vmatprep.mubr.bf16.mxu0 0
    %150 = vmatmul.mubr.bf16.gmra.mrb[0].mxu0 %v44
    %v151 = vpop.f32.mrb[0].mxu0
    %v152 = vadd.f32 0.0, %v151
    %v153 = vpop.f32.mrb[0].mxu0
    %v154 = vpop.f32.mrb[0].mxu0
    %v155 = vadd.f32 0.0, %v154
    %v156 = vpop.f32.mrb[0].mxu0
    %157 = vdwg.mxu0
    %v158 = vadd.f32 %v38, %v144
    %v159 = vadd.f32 %v39, %v147
    %v160 = vadd.f32 %v40, %v152
    %v161 = vadd.f32 %v41, %v155
    %162 = vst [vmem:[#allocation5] sm:$0xff] %v158
    %163 = vst [vmem:[#allocation5 + $0x8] sm:$0xff] %v159
    %164 = vst [vmem:[#allocation5 + $0x10] sm:$0xff] %v160
    %165 = vst [vmem:[#allocation5 + $0x18] sm:$0xff] %v161
    // Predicated region
    $region22: #{tpu_custom_call.1} parent=1 // pred_check
      %p166 = pneg %p30
    $region23: #{tpu_custom_call.1} parent=1 // pred_check_branch
      %168 = sbr.rel (%p166) target = $region25
    $region24: #{tpu_custom_call.1} parent=1 // pred_region
      %v169 = vld [vmem:[#allocation5] sm:$0xff]
      %v170 = vld [vmem:[#allocation5 + $0x8] sm:$0xff]
      %v171 = vld [vmem:[#allocation5 + $0x10] sm:$0xff]
      %v172 = vld [vmem:[#allocation5 + $0x18] sm:$0xff]
      %v173 = vld [vmem:[%s2] sm:$0xff]
      %v174 = vld [vmem:[%s2 + $0x8] sm:$0xff]
      %v175 = vld [vmem:[%s2 + $0x10] sm:$0xff]
      %v176 = vld [vmem:[%s2 + $0x18] sm:$0xff]
      %178 = vset.pattern.permute.xlu0 0
      %179 = vperm.xlu0 %178, %v173
      %v180 = vpop.permute.xlu0 %179
      %183 = vset.pattern.permute.xlu0 0
      %184 = vperm.xlu0 %183, %v174
      %v185 = vpop.permute.xlu0 %184
      %188 = vset.pattern.permute.xlu0 0
      %189 = vperm.xlu0 %188, %v175
      %v190 = vpop.permute.xlu0 %189
      %193 = vset.pattern.permute.xlu0 0
      %194 = vperm.xlu0 %193, %v176
      %v195 = vpop.permute.xlu0 %194
      %v197 = vmul.f32 %v169, %v180
      %v198 = vmul.f32 %v170, %v185
      %v199 = vmul.f32 %v171, %v190
      %v200 = vmul.f32 %v172, %v195
      %201 = vst [vmem:[#allocation5] sm:$0xff] %v197
      %202 = vst [vmem:[#allocation5 + $0x8] sm:$0xff] %v198
      %203 = vst [vmem:[#allocation5 + $0x10] sm:$0xff] %v199
      %204 = vst [vmem:[#allocation5 + $0x18] sm:$0xff] %v200
    $region25: #{tpu_custom_call.1} parent=1 // pred_fallthru
      _
    // Predicated region
    $region26: #{tpu_custom_call.1} parent=1 // pred_check
      _
    $region27: #{tpu_custom_call.1} parent=1 // pred_check_branch
      %206 = sbr.rel (0) target = $region29
    $region28: #{tpu_custom_call.1} parent=1 // pred_region
      %s208 = ssub.s32 512, 512
      %209 = vsyncadd [#allocation4], %s208
      %s210 = sshll.u32 [#allocation5], 4
      %s211 = int_to_ptr.vmem [resolvable:$true] %s210
      %216 = dma.vmem_to_hbm [thread:$0]  %s211, 512, %s3, [#allocation4], 128, 128, 8
    $region29: #{tpu_custom_call.1} parent=1 // pred_fallthru
      _
    // Predicated region
    $region30: #{tpu_custom_call.1} parent=1 // pred_check
      _
    $region31: #{tpu_custom_call.1} parent=1 // pred_check_branch
      %218 = sbr.rel (0) target = $region33
    $region32: #{tpu_custom_call.1} parent=1 // pred_region
      %219 = dma.done [#allocation4], 512
    $region33: #{tpu_custom_call.1} parent=1 // pred_fallthru
      _
    %220 = vsyncpa [#allocation3], 1
    %221 = vsyncpa [#allocation4], 1

</llo_original>
